<compile_context>
chip_gen: v5e
topology: v5e:2x2
jax: 0.10.0
libtpu: 0.0.40
codegen_flags: <defaults>
</compile_context>

<pallas_src>
import functools

import jax
import jax.numpy as jnp
from jax.experimental import pallas as pl
from jax.experimental.pallas import tpu as pltpu

_SUBLANE = 8
_LANE = 128


def _add_bias_kernel(x_ref, b_ref, o_ref):
    # out[r, s] = x[r, s] + bias[r]   (bias broadcast along the lane axis)
    o_ref[...] = x_ref[...] + b_ref[...]


def _sublane_quantum(itemsize):
    # Sub-32-bit dtypes pack along sublanes: 8 for f32, 16 for bf16, 32 for int8/fp8.
    return (4 * _SUBLANE) // max(itemsize, 1)


def _device_budget():
    """(default target block bytes, scoped-VMEM clamp) per TPU generation."""
    try:
        kind = jax.devices()[0].device_kind.lower()
    except Exception:  # pragma: no cover - defensive fallback
        kind = ""
    if "v7" in kind:
        # 64 MiB VMEM per TensorCore + 3.2 TB/s HBM -> ~8 MiB blocks, tight clamp.
        return 8 << 20, 48 << 20
    # v5e / v6e: 128 MiB VMEM -> bigger blocks; higher scoped limit is free.
    return 16 << 20, 96 << 20


def _row_split_factor(rows, cols, quantum):
    """k so (rows, cols) -> (rows*k, cols//k) gives sublane-dense, lane-dense tiles."""
    if rows >= quantum or cols % _LANE or cols <= _LANE:
        return 1
    best = 1
    for k in range(2, min(cols // _LANE, 64) + 1):
        if cols % (k * _LANE):
            continue                                   # keep the lane axis dense
        if (rows * k) % quantum == 0:
            return k                                   # perfectly sublane-dense
        if best == 1 and rows * k >= quantum:
            best = k
    return best


def _choose_tiles(rows, cols, itemsize, target_bytes, quantum):
    """Pick a (tm, tn) block of ~target_bytes that is (quantum, 128)-legal."""
    if rows <= quantum or rows * cols * itemsize <= target_bytes:
        tm = rows                                      # full dim -> always legal
    else:
        tm = max(quantum, (target_bytes // (cols * itemsize)) // quantum * quantum)
    if tm * cols * itemsize <= target_bytes or cols <= _LANE:
        tn = cols                                      # full dim -> always legal
    else:
        tn = max(_LANE, (target_bytes // (tm * itemsize)) // _LANE * _LANE)
        tn = min(tn, cols)
    return tm, tn


def _plan_grid(rows, cols, itemsize, target_bytes, quantum):
    total = rows * cols * itemsize
    # Keep >= ~4 grid steps so double-buffering overlaps read/compute/write,
    # but never shrink a block below ~64 KiB.
    target = max(min(target_bytes, total // 4), 64 << 10)
    tm, tn = _choose_tiles(rows, cols, itemsize, target, quantum)
    rb, cb = pl.cdiv(rows, tm), pl.cdiv(cols, tn)
    # v7x shards ("parallel","parallel") grids across two TensorCores: prefer an
    # even column-block count when a single row block carries all the work.
    if rb == 1 and cb % 2 == 1 and cols % _LANE == 0 and cols >= 2 * _LANE:
        cand = pl.cdiv(pl.cdiv(cols, cb + 1), _LANE) * _LANE
        if cand >= _LANE and pl.cdiv(cols, cand) % 2 == 0:
            tn = cand
            cb = pl.cdiv(cols, tn)
    return tm, tn, rb, cb


def dummy_adm_forward(x, t, c, variance_flag=False, *,
                      target_block_bytes=None, min_pallas_bytes=2 << 20,
                      donate_x=False):
    """Mirrors DummyADM.forward.

    x: (B, C, H, W); t: (B, 1); c: dict[str, (B, C)].
    Returns {"prediction": (B, C, H, W), "variance_value": x or None}.
    Output dtype follows x.dtype (t / c are cast to it).
    """
    B, C, H, W = x.shape
    rows, cols = B * C, H * W
    count = len(c)
    itemsize = jnp.dtype(x.dtype).itemsize

    # Fold t + sum(c) + count into one tiny (B*C, 1) bias, computed once.
    if count:
        c_sum = functools.reduce(lambda a, b: a + b, c.values())
    else:
        c_sum = jnp.zeros((B, C), dtype=x.dtype)
    bias = (t.astype(x.dtype) + c_sum.astype(x.dtype)
            + jnp.asarray(count, dtype=x.dtype))
    bias = jnp.broadcast_to(bias, (B, C)).reshape(rows, 1)

    variance_value = x if variance_flag else None

    # Fast path: for tiny activations the pallas_call launch + per-step overhead
    # dominates and XLA already runs this broadcast add at roofline.
    if rows * cols * itemsize < min_pallas_bytes:
        pred = x + bias.reshape(B, C, 1, 1)
        return {"prediction": pred, "variance_value": variance_value}

    default_target, vmem_clamp = _device_budget()
    if target_block_bytes is None:
        target_block_bytes = default_target

    quantum = _sublane_quantum(itemsize)
    x2 = x.reshape(rows, cols)                         # lane-dense 2-D slab
    k = _row_split_factor(rows, cols, quantum)
    if k > 1:                                          # sublane-densify tiny B*C
        rows, cols = rows * k, cols // k
        x2 = x2.reshape(rows, cols)
        bias = jnp.repeat(bias, k, axis=0)

    tm, tn, rb, cb = _plan_grid(rows, cols, itemsize, target_block_bytes, quantum)

    tile_bytes = tm * tn * itemsize
    need = 4 * tile_bytes + (4 << 20)                  # dbl-buffered in+out + slack
    vmem_limit = int(max(min(max(need, 32 << 20), vmem_clamp), need))

    # variance_value aliases x, so only alias the output onto x when it is safe.
    alias = {0: 0} if (donate_x and not variance_flag) else {}

    pred = pl.pallas_call(
        _add_bias_kernel,
        out_shape=jax.ShapeDtypeStruct((rows, cols), x.dtype),
        grid=(rb, cb),                                 # columns innermost
        in_specs=[
            pl.BlockSpec((tm, tn), lambda i, j: (i, j)),   # streamed x tile
            pl.BlockSpec((tm, 1), lambda i, j: (i, 0)),    # bias: constant over j
        ],
        out_specs=pl.BlockSpec((tm, tn), lambda i, j: (i, j)),
        input_output_aliases=alias,
        compiler_params=pltpu.CompilerParams(
            dimension_semantics=("parallel", "parallel"),
            vmem_limit_bytes=vmem_limit,
        ),
    )(x2, bias)

    pred = pred.reshape(B, C, H, W)
    return {"prediction": pred, "variance_value": variance_value}


def _reference(x, t, c):
    # Same bias-folding order as the kernel (keeps low-precision dtypes comparable).
    count = len(c)
    if count:
        c_sum = functools.reduce(lambda a, b: a + b, c.values())
    else:
        c_sum = jnp.zeros(x.shape[:2], dtype=x.dtype)
    bias = (t.astype(x.dtype) + c_sum.astype(x.dtype)
            + jnp.asarray(count, dtype=x.dtype))
    return x + bias[..., None, None]


if __name__ == "__main__":
    def _rand_inputs(key, B, C, H, W, n_cond, dtype=jnp.float32):
        keys = jax.random.split(key, 2 + max(n_cond, 1))
        x = jax.random.normal(keys[0], (B, C, H, W), jnp.float32).astype(dtype)
        t = jax.random.normal(keys[1], (B, 1), jnp.float32).astype(dtype)
        c = {f"cond_{i}":
             jax.random.normal(keys[2 + i], (B, C), jnp.float32).astype(dtype)
             for i in range(n_cond)}
        return x, t, c

    k1, k2, k3, k4, k5 = jax.random.split(jax.random.PRNGKey(0), 5)

    # Case 1: test-fixture shape (B=1, embed_dim=6, s=4) -> small-input fast path.
    x, t, c = _rand_inputs(k1, 1, 6, 4, 4, 2)
    out = dummy_adm_forward(x, t, c, variance_flag=False)
    pred = jax.block_until_ready(out["prediction"])
    assert pred.shape == x.shape and out["variance_value"] is None
    assert jnp.allclose(pred, _reference(x, t, c), atol=1e-6, rtol=1e-6)

    # Same inputs forced through the Pallas kernel, plus variance_flag=True path.
    out_p = dummy_adm_forward(x, t, c, variance_flag=True, min_pallas_bytes=0)
    jax.block_until_ready(out_p["prediction"])
    assert jnp.allclose(out_p["prediction"], _reference(x, t, c), atol=1e-6, rtol=1e-6)
    assert jnp.array_equal(out_p["variance_value"], x)

    # Case 2: (2, 4, 16, 16) through the kernel (even column-block split).
    x2, t2, c2 = _rand_inputs(k2, 2, 4, 16, 16, 3)
    out2 = dummy_adm_forward(x2, t2, c2, min_pallas_bytes=0)
    jax.block_until_ready(out2["prediction"])
    assert jnp.allclose(out2["prediction"], _reference(x2, t2, c2), atol=1e-6, rtol=1e-6)

    # Case 3: multi-step (row x col) grid with a partial edge row block.
    x3, t3, c3 = _rand_inputs(k3, 2, 5, 128, 128, 1)
    out3 = dummy_adm_forward(x3, t3, c3, min_pallas_bytes=0,
                             target_block_bytes=64 << 10)
    jax.block_until_ready(out3["prediction"])
    assert jnp.allclose(out3["prediction"], _reference(x3, t3, c3), atol=1e-6, rtol=1e-6)

    # Case 4: bf16 with tiny B*C -> sublane-densifying row split; empty cond dict.
    x4, t4, _ = _rand_inputs(k4, 1, 6, 64, 64, 1, dtype=jnp.bfloat16)
    out4 = dummy_adm_forward(x4, t4, {}, min_pallas_bytes=0)
    jax.block_until_ready(out4["prediction"])
    assert jnp.allclose(out4["prediction"].astype(jnp.float32),
                        _reference(x4, t4, {}).astype(jnp.float32),
                        atol=1e-2, rtol=1e-2)

    # Case 5: donate_x path (input_output_aliases), variance_flag stays False.
    x5, t5, c5 = _rand_inputs(k5, 1, 6, 32, 32, 2)
    ref5 = _reference(x5, t5, c5)
    out5 = dummy_adm_forward(x5, t5, c5, min_pallas_bytes=0, donate_x=True)
    jax.block_until_ready(out5["prediction"])
    assert jnp.allclose(out5["prediction"], ref5, atol=1e-6, rtol=1e-6)

    print("KERNEL_OK")
</pallas_src>

<mosaic_0001>
module attributes {stable_mosaic.version = 11 : i64} {
  func.func @_add_bias_kernel(%arg0: i32, %arg1: i32, %arg2: memref<6x16xf32, #tpu.memory_space<vmem>>, %arg3: memref<6x1xf32, #tpu.memory_space<vmem>>, %arg4: memref<6x16xf32, #tpu.memory_space<vmem>>) attributes {dimension_semantics = [#tpu.dimension_semantics<parallel>, #tpu.dimension_semantics<parallel>], iteration_bounds = array<i64: 1, 1>, scalar_prefetch = 0 : i64, scratch_operands = 0 : i64, tpu.core_type = #tpu.core_type<tc>, window_params = [{transform_indices = @transform_0, window_bounds = array<i64: 6, 16>}, {transform_indices = @transform_1, window_bounds = array<i64: 6, 1>}, {transform_indices = @transform_2, window_bounds = array<i64: 6, 16>}]} {
    %c0 = arith.constant 0 : index
    %c0_0 = arith.constant 0 : index
    %0 = vector.load %arg2[%c0, %c0_0] : memref<6x16xf32, #tpu.memory_space<vmem>>, vector<6x16xf32>
    %c0_1 = arith.constant 0 : index
    %c0_2 = arith.constant 0 : index
    %1 = vector.load %arg3[%c0_1, %c0_2] : memref<6x1xf32, #tpu.memory_space<vmem>>, vector<6x1xf32>
    %2 = vector.broadcast %1 : vector<6x1xf32> to vector<6x16xf32>
    %3 = arith.addf %0, %2 : vector<6x16xf32>
    %c0_3 = arith.constant 0 : index
    %c0_4 = arith.constant 0 : index
    %4 = vector.load %arg4[%c0_3, %c0_4] : memref<6x16xf32, #tpu.memory_space<vmem>>, vector<6x16xf32>
    tpu.vector_store %arg4[%c0_3, %c0_4], %3 {strides = array<i32>} : memref<6x16xf32, #tpu.memory_space<vmem>>, vector<6x16xf32>,
    return
  }
  func.func @transform_0(%arg0: i32, %arg1: i32) -> (i32, i32) {
    %c0_i32 = arith.constant 0 : i32
    return %arg0, %arg1 : i32, i32
  }
  func.func @transform_1(%arg0: i32, %arg1: i32) -> (i32, i32) {
    %c0_i32 = arith.constant 0 : i32
    %c0_i32_0 = arith.constant 0 : i32
    return %arg0, %c0_i32 : i32, i32
  }
  func.func @transform_2(%arg0: i32, %arg1: i32) -> (i32, i32) {
    %c0_i32 = arith.constant 0 : i32
    return %arg0, %arg1 : i32, i32
  }
}

</mosaic_0001>

<llo_original>
// kernel: tpu_custom_call.1
$region0: #{tpu_custom_call.1}
  #allocation0 [shape = 'u32[]', space=smem, size = 0x4, offset = 0x4, fixed_abs, tag = 'smem constant byte address 0x4 - core index']
  #allocation1 [shape = 'u32[72,128]{1,0:T(1,128)}', space=vmem, size = 0x9000, scoped, tag = 'internal scratch']
  %s0 = inlined_call_operand.vmem [shape: f32[6,16], index: 0, kind: input, shape index: {}]
  %s1 = inlined_call_operand.vmem [shape: f32[6,1], index: 1, kind: input, shape index: {}]
  %s2 = inlined_call_operand.hbm [shape: f32[6,16], index: 2, kind: output, shape index: {}]
  %s3 = sld [smem:[#allocation0]]
  $region18: #{tpu_custom_call.1} parent=0
    _
  %s5 = ssub.s32 1, %s3
  %s6 = scalar_select 0, %s5, %s3
  $region1: #{tpu_custom_call.1} parent=0
    #allocation2 [shape = 'u8[4096]{0}', space=vmem, size = 0x1000, scoped, tag = 'output window, operand 0, single buffered']
    #allocation3 [shape = 's32[1]{0}', space=sflag, size = 0x4, scoped, tag = 'scoped memory for tpu_custom_call.1']
    %7 = vsyncpa [#allocation3], 0
    // Predicated region
    $region2: #{tpu_custom_call.1} parent=1 // pred_check
      _
    $region3: #{tpu_custom_call.1} parent=1 // pred_check_branch
      %9 = sbr.rel (0) target = $region5
    $region4: #{tpu_custom_call.1} parent=1 // pred_region
      _
    $region5: #{tpu_custom_call.1} parent=1 // pred_fallthru
      _
    // Predicated region
    $region6: #{tpu_custom_call.1} parent=1 // pred_check
      _
    $region7: #{tpu_custom_call.1} parent=1 // pred_check_branch
      %11 = sbr.rel (0) target = $region9
    $region8: #{tpu_custom_call.1} parent=1 // pred_region
      _
    $region9: #{tpu_custom_call.1} parent=1 // pred_fallthru
      _
    %v12 = vld [vmem:[%s0] sm:$0x3f]
    %v13 = vld [vmem:[%s1] sm:$0x3f]
    %15 = vset.pattern.permute.xlu0 0
    %16 = vperm.xlu0 %15, %v13
    %v17 = vpop.permute.xlu0 %16
    %v19 = vadd.f32 %v12, %v17
    %vm20 = vcmask 128000
    %21 = vst.msk [vmem:[#allocation2] sm:$0x3f] %vm20, %v19
    // Predicated region
    $region10: #{tpu_custom_call.1} parent=1 // pred_check
      _
    $region11: #{tpu_custom_call.1} parent=1 // pred_check_branch
      %23 = sbr.rel (0) target = $region13
    $region12: #{tpu_custom_call.1} parent=1 // pred_region
      %25 = vsyncadd [#allocation3], 0
      %s27 = sshll.u32 [#allocation2], 4
      %s28 = int_to_ptr.vmem [resolvable:$true] %s27
      %s29 = sshll.u32 %s2, 4
      %s30 = int_to_ptr.hbm [resolvable:$true] %s29
      %32 = dma.vmem_to_hbm [thread:$0]  %s28, 128, %s30, [#allocation3]
    $region13: #{tpu_custom_call.1} parent=1 // pred_fallthru
      _
    // Predicated region
    $region14: #{tpu_custom_call.1} parent=1 // pred_check
      _
    $region15: #{tpu_custom_call.1} parent=1 // pred_check_branch
      %34 = sbr.rel (0) target = $region17
    $region16: #{tpu_custom_call.1} parent=1 // pred_region
      %36 = dma.done [#allocation3], 128
    $region17: #{tpu_custom_call.1} parent=1 // pred_fallthru
      _
    %37 = vsyncpa [#allocation3], 1

</llo_original>
